<compile_context>
chip_gen: v7x
topology: tpu7x:2x2x1
jax: 0.10.0
libtpu: 0.0.40
codegen_flags: <defaults>
</compile_context>

<pallas_src>
import numpy as np
import jax
import jax.numpy as jnp
from jax import lax
from jax.experimental import pallas as pl
from jax.experimental.pallas import tpu as pltpu


_BISECT_ITERS = 12   # even (loop body does 2 steps); bracket width -> 2^-12
_NEWTON_ITERS = 3    # exact closed-form refinements (each never overshoots)


# ---------------------------------------------------------------------------
# Kernel
# ---------------------------------------------------------------------------
def _sparsemax_kernel(x_ref, o_ref):
    """Sparsemax over the last axis of a (block_rows, d) tile.

    f(t) = sum_i relu(x_i - t) - 1 is convex, piecewise linear and strictly
    decreasing around its root tau; after the max shift the root lies in
    [-1, 0).  A short bisection localizes tau, then the refinement
        t <- (sum_{x_i > t} x_i - 1) / #{x_i > t}
    (a Newton step on f) never overshoots tau when started from t <= tau and
    lands exactly on tau as soon as {x_i > t} equals the true support, so the
    output matches the sort/cumsum reference to f32 rounding.
    """
    x = x_ref[...].astype(jnp.float32)                        # (bm, d)
    x = x - jnp.max(x, axis=-1, keepdims=True)                # max(x) == 0

    bm = x.shape[0]
    lo0 = jnp.full((bm, 1), -1.0, jnp.float32)                # f(lo) >= 0
    hi0 = jnp.zeros((bm, 1), jnp.float32)                     # f(hi) <  0

    def bisect_step(carry):
        lo, hi = carry
        mid = 0.5 * (lo + hi)
        f = jnp.sum(jnp.maximum(x - mid, 0.0), axis=-1, keepdims=True) - 1.0
        ge0 = f >= 0.0
        return jnp.where(ge0, mid, lo), jnp.where(ge0, hi, mid)

    def body(_, carry):                                       # unrolled by 2
        return bisect_step(bisect_step(carry))

    lo, _ = lax.fori_loop(0, _BISECT_ITERS // 2, body, (lo0, hi0))

    tau = lo                                                  # tau_hat <= tau
    for _ in range(_NEWTON_ITERS):                            # static unroll
        sup = (x > tau).astype(jnp.float32)                   # (bm, d)
        k = jnp.sum(sup, axis=-1, keepdims=True)              # >= 1 (x_max = 0 > tau)
        s = jnp.sum(sup * x, axis=-1, keepdims=True)
        tau = (s - 1.0) / k

    o_ref[...] = jnp.maximum(x - tau, 0.0).astype(o_ref.dtype)


# ---------------------------------------------------------------------------
# Wrapper helpers
# ---------------------------------------------------------------------------
def _cdiv(a, b):
    return -(-a // b)


def _vmem_params():
    """(vmem_limit_bytes, sizing_budget_bytes) per chip generation."""
    cap = None
    try:
        cap = getattr(pltpu.get_tpu_info(), "vmem_capacity_bytes", None)
    except Exception:
        cap = None
    if cap is not None and cap > (64 << 20):
        limit = 64 << 20          # v5e/v6e: 128 MiB physical VMEM
    else:
        limit = 32 << 20          # v7x (64 MiB/TC) or unknown: stay conservative
    budget = limit - (16 << 20)   # headroom for double-buffered I/O + compiler scratch
    return limit, budget


def _pick_block_rows(rows, d, budget):
    """Largest row tile whose f32 working set fits the scoped-VMEM budget."""
    if rows <= 8:
        return rows                       # single block == full row dim (allowed)
    per_row = 56 * d + 512                # ~a handful of (1,d) f32 temps + dbl-buffered I/O
    bm = budget // per_row
    bm = max(8, min(1024, (bm // 8) * 8))
    bm = min(bm, ((rows + 7) // 8) * 8)
    # Prefer an even grid (>= 2 blocks) so both v7x TensorCores get work; the
    # extra grid step costs ~0.35 us on single-TC v5e/v6e.
    n = _cdiv(rows, bm)
    if n % 2:
        bm2 = ((_cdiv(rows, n + 1) + 7) // 8) * 8
        if bm2 >= 8:
            bm = bm2
    return bm


# ---------------------------------------------------------------------------
# Public API
# ---------------------------------------------------------------------------
def sparsemax(x, dim=-1):
    """Sparsemax along `dim`; same shape and dtype as the input."""
    orig_dtype = x.dtype
    xm = jnp.moveaxis(x, dim, -1)
    lead_shape = xm.shape[:-1]
    d = xm.shape[-1]
    rows = int(np.prod(lead_shape)) if lead_shape else 1
    x2 = xm.reshape(rows, d)              # no pad, no dtype change

    vmem_limit, budget = _vmem_params()
    block_rows = _pick_block_rows(rows, d, budget)
    grid = (_cdiv(rows, block_rows),)

    itemsize = jnp.dtype(orig_dtype).itemsize
    cost = pl.CostEstimate(
        flops=int(rows * d * (2 * _BISECT_ITERS + 4 * _NEWTON_ITERS + 6)),
        transcendentals=0,
        bytes_accessed=int(2 * rows * d * itemsize))

    out = pl.pallas_call(
        _sparsemax_kernel,
        out_shape=jax.ShapeDtypeStruct((rows, d), orig_dtype),
        grid_spec=pltpu.PrefetchScalarGridSpec(
            num_scalar_prefetch=0,
            grid=grid,
            # Last dim = full d (allowed even when d % 128 != 0); boundary row
            # blocks are clipped by Pallas, so no wrapper-side pad/slice passes.
            in_specs=[pl.BlockSpec((block_rows, d), lambda i: (i, 0))],
            out_specs=pl.BlockSpec((block_rows, d), lambda i: (i, 0)),
        ),
        compiler_params=pltpu.CompilerParams(
            dimension_semantics=("parallel",),
            vmem_limit_bytes=vmem_limit),
        cost_estimate=cost,
    )(x2)

    return jnp.moveaxis(out.reshape(lead_shape + (d,)), -1, dim)


class Sparsemax:
    """Drop-in functional equivalent of the PyTorch Sparsemax module."""

    def __init__(self, dim=-1):
        self.dim = dim

    def __call__(self, x):
        return sparsemax(x, self.dim)


# ---------------------------------------------------------------------------
# Pure-JAX reference mirroring the PyTorch sorted/cumsum implementation.
# ---------------------------------------------------------------------------
def _sparsemax_ref(x, dim=-1):
    x = x - jnp.max(x, axis=dim, keepdims=True)
    x_srt = -jnp.sort(-x, axis=dim)                 # descending
    x_cumsum = jnp.cumsum(x_srt, axis=dim) - 1.0
    d = x.shape[dim]
    shape = [1] * x.ndim
    shape[dim] = d
    rhos = jnp.arange(1, d + 1, dtype=x.dtype).reshape(shape)
    support = rhos * x_srt > x_cumsum
    supp_size = jnp.sum(support, axis=dim, keepdims=True)
    tau = jnp.take_along_axis(x_cumsum, supp_size - 1, axis=dim)
    tau = tau / supp_size.astype(x.dtype)
    return jnp.clip(x - tau, 0.0, None)


if __name__ == "__main__":
    key = jax.random.PRNGKey(0)
    k1, k2, k3 = jax.random.split(key, 3)

    # Module default: sparsemax along the last dim. (batch=2, seq=8, hidden=32)
    x = jax.random.normal(k1, (2, 8, 32), dtype=jnp.float32)
    out = jax.block_until_ready(sparsemax(x, dim=-1))
    ref = _sparsemax_ref(x, dim=-1)
    np.testing.assert_allclose(np.asarray(out), np.asarray(ref),
                               rtol=1e-5, atol=1e-5)
    np.testing.assert_allclose(np.asarray(jnp.sum(out, axis=-1)),
                               np.ones((2, 8), np.float32),
                               rtol=1e-5, atol=1e-5)

    # Non-default dim exercises the moveaxis wrapper path.
    out_d1 = jax.block_until_ready(sparsemax(x, dim=1))
    np.testing.assert_allclose(np.asarray(out_d1),
                               np.asarray(_sparsemax_ref(x, dim=1)),
                               rtol=1e-5, atol=1e-5)

    # Ragged d (200 lanes, not a multiple of 128) and 15 rows (partial last
    # row block via the cdiv grid — no wrapper padding).
    x2 = jax.random.normal(k2, (3, 5, 200), dtype=jnp.float32)
    out2 = jax.block_until_ready(sparsemax(x2, dim=-1))
    np.testing.assert_allclose(np.asarray(out2),
                               np.asarray(_sparsemax_ref(x2, dim=-1)),
                               rtol=1e-5, atol=1e-5)

    # Larger d with wider dynamic range.
    x3 = jax.random.normal(k3, (5, 640), dtype=jnp.float32) * 3.0
    out3 = jax.block_until_ready(sparsemax(x3, dim=-1))
    np.testing.assert_allclose(np.asarray(out3),
                               np.asarray(_sparsemax_ref(x3, dim=-1)),
                               rtol=1e-5, atol=1e-5)

    print("KERNEL_OK")
</pallas_src>

<mosaic_0001>
module attributes {stable_mosaic.version = 11 : i64} {
  func.func @_sparsemax_kernel(%arg0: i32, %arg1: memref<8x32xf32, #tpu.memory_space<vmem>>, %arg2: memref<8x32xf32, #tpu.memory_space<vmem>>) attributes {dimension_semantics = [#tpu.dimension_semantics<parallel>], iteration_bounds = array<i64: 2>, scalar_prefetch = 0 : i64, scratch_operands = 0 : i64, tpu.core_type = #tpu.core_type<tc>, window_params = [{transform_indices = @transform_0, window_bounds = array<i64: 8, 32>}, {transform_indices = @transform_1, window_bounds = array<i64: 8, 32>}]} {
    %c0 = arith.constant 0 : index
    %c0_0 = arith.constant 0 : index
    %0 = vector.load %arg1[%c0, %c0_0] : memref<8x32xf32, #tpu.memory_space<vmem>>, vector<8x32xf32>
    %cst = arith.constant dense<0xFF800000> : vector<8xf32>
    %1 = vector.multi_reduction <maximumf>, %0, %cst [1] : vector<8x32xf32> to vector<8xf32>
    %2 = vector.shape_cast %1 : vector<8xf32> to vector<8x1xf32>
    %3 = vector.broadcast %2 : vector<8x1xf32> to vector<8x32xf32>
    %4 = arith.subf %0, %3 : vector<8x32xf32>
    %cst_1 = arith.constant -1.000000e+00 : f32
    %5 = vector.broadcast %cst_1 : f32 to vector<8x1xf32>
    %cst_2 = arith.constant 0.000000e+00 : f32
    %6 = vector.broadcast %cst_2 : f32 to vector<8x1xf32>
    %c0_i32 = arith.constant 0 : i32
    %c6_i32 = arith.constant 6 : i32
    %7 = arith.addi %c0_i32, %c6_i32 : i32
    %c1_i32 = arith.constant 1 : i32
    %8:2 = scf.for %arg3 = %c0_i32 to %7 step %c1_i32 iter_args(%arg4 = %5, %arg5 = %6) -> (vector<8x1xf32>, vector<8x1xf32>)  : i32 {
      %50 = arith.addf %arg4, %arg5 : vector<8x1xf32>
      %cst_15 = arith.constant 5.000000e-01 : f32
      %51 = vector.broadcast %cst_15 : f32 to vector<8x1xf32>
      %52 = arith.mulf %51, %50 : vector<8x1xf32>
      %53 = vector.broadcast %52 : vector<8x1xf32> to vector<8x32xf32>
      %54 = arith.subf %4, %53 : vector<8x32xf32>
      %cst_16 = arith.constant 0.000000e+00 : f32
      %55 = vector.broadcast %cst_16 : f32 to vector<8x32xf32>
      %56 = arith.maximumf %54, %55 : vector<8x32xf32>
      %cst_17 = arith.constant dense<0.000000e+00> : vector<8xf32>
      %57 = vector.multi_reduction <add>, %56, %cst_17 [1] : vector<8x32xf32> to vector<8xf32>
      %58 = vector.shape_cast %57 : vector<8xf32> to vector<8x1xf32>
      %cst_18 = arith.constant 1.000000e+00 : f32
      %59 = vector.broadcast %cst_18 : f32 to vector<8x1xf32>
      %60 = arith.subf %58, %59 : vector<8x1xf32>
      %cst_19 = arith.constant 0.000000e+00 : f32
      %61 = vector.broadcast %cst_19 : f32 to vector<8x1xf32>
      %62 = arith.cmpf oge, %60, %61 : vector<8x1xf32>
      %63 = arith.select %62, %52, %arg4 : vector<8x1xi1>, vector<8x1xf32>
      %64 = arith.select %62, %arg5, %52 : vector<8x1xi1>, vector<8x1xf32>
      %65 = arith.addf %63, %64 : vector<8x1xf32>
      %cst_20 = arith.constant 5.000000e-01 : f32
      %66 = vector.broadcast %cst_20 : f32 to vector<8x1xf32>
      %67 = arith.mulf %66, %65 : vector<8x1xf32>
      %68 = vector.broadcast %67 : vector<8x1xf32> to vector<8x32xf32>
      %69 = arith.subf %4, %68 : vector<8x32xf32>
      %cst_21 = arith.constant 0.000000e+00 : f32
      %70 = vector.broadcast %cst_21 : f32 to vector<8x32xf32>
      %71 = arith.maximumf %69, %70 : vector<8x32xf32>
      %cst_22 = arith.constant dense<0.000000e+00> : vector<8xf32>
      %72 = vector.multi_reduction <add>, %71, %cst_22 [1] : vector<8x32xf32> to vector<8xf32>
      %73 = vector.shape_cast %72 : vector<8xf32> to vector<8x1xf32>
      %cst_23 = arith.constant 1.000000e+00 : f32
      %74 = vector.broadcast %cst_23 : f32 to vector<8x1xf32>
      %75 = arith.subf %73, %74 : vector<8x1xf32>
      %cst_24 = arith.constant 0.000000e+00 : f32
      %76 = vector.broadcast %cst_24 : f32 to vector<8x1xf32>
      %77 = arith.cmpf oge, %75, %76 : vector<8x1xf32>
      %78 = arith.select %77, %67, %63 : vector<8x1xi1>, vector<8x1xf32>
      %79 = arith.select %77, %64, %67 : vector<8x1xi1>, vector<8x1xf32>
      scf.yield %78, %79 : vector<8x1xf32>, vector<8x1xf32>
    }
    %9 = vector.broadcast %8#0 : vector<8x1xf32> to vector<8x32xf32>
    %10 = arith.cmpf ogt, %4, %9 : vector<8x32xf32>
    %11 = arith.extui %10 : vector<8x32xi1> to vector<8x32xi32>
    %12 = arith.sitofp %11 : vector<8x32xi32> to vector<8x32xf32>
    %cst_3 = arith.constant dense<0.000000e+00> : vector<8xf32>
    %13 = vector.multi_reduction <add>, %12, %cst_3 [1] : vector<8x32xf32> to vector<8xf32>
    %14 = vector.shape_cast %13 : vector<8xf32> to vector<8x1xf32>
    %15 = arith.mulf %12, %4 : vector<8x32xf32>
    %cst_4 = arith.constant dense<0.000000e+00> : vector<8xf32>
    %16 = vector.multi_reduction <add>, %15, %cst_4 [1] : vector<8x32xf32> to vector<8xf32>
    %17 = vector.shape_cast %16 : vector<8xf32> to vector<8x1xf32>
    %cst_5 = arith.constant 1.000000e+00 : f32
    %18 = vector.broadcast %cst_5 : f32 to vector<8x1xf32>
    %19 = arith.subf %17, %18 : vector<8x1xf32>
    %20 = arith.divf %19, %14 : vector<8x1xf32>
    %21 = vector.broadcast %20 : vector<8x1xf32> to vector<8x32xf32>
    %22 = arith.cmpf ogt, %4, %21 : vector<8x32xf32>
    %23 = arith.extui %22 : vector<8x32xi1> to vector<8x32xi32>
    %24 = arith.sitofp %23 : vector<8x32xi32> to vector<8x32xf32>
    %cst_6 = arith.constant dense<0.000000e+00> : vector<8xf32>
    %25 = vector.multi_reduction <add>, %24, %cst_6 [1] : vector<8x32xf32> to vector<8xf32>
    %26 = vector.shape_cast %25 : vector<8xf32> to vector<8x1xf32>
    %27 = arith.mulf %24, %4 : vector<8x32xf32>
    %cst_7 = arith.constant dense<0.000000e+00> : vector<8xf32>
    %28 = vector.multi_reduction <add>, %27, %cst_7 [1] : vector<8x32xf32> to vector<8xf32>
    %29 = vector.shape_cast %28 : vector<8xf32> to vector<8x1xf32>
    %cst_8 = arith.constant 1.000000e+00 : f32
    %30 = vector.broadcast %cst_8 : f32 to vector<8x1xf32>
    %31 = arith.subf %29, %30 : vector<8x1xf32>
    %32 = arith.divf %31, %26 : vector<8x1xf32>
    %33 = vector.broadcast %32 : vector<8x1xf32> to vector<8x32xf32>
    %34 = arith.cmpf ogt, %4, %33 : vector<8x32xf32>
    %35 = arith.extui %34 : vector<8x32xi1> to vector<8x32xi32>
    %36 = arith.sitofp %35 : vector<8x32xi32> to vector<8x32xf32>
    %cst_9 = arith.constant dense<0.000000e+00> : vector<8xf32>
    %37 = vector.multi_reduction <add>, %36, %cst_9 [1] : vector<8x32xf32> to vector<8xf32>
    %38 = vector.shape_cast %37 : vector<8xf32> to vector<8x1xf32>
    %39 = arith.mulf %36, %4 : vector<8x32xf32>
    %cst_10 = arith.constant dense<0.000000e+00> : vector<8xf32>
    %40 = vector.multi_reduction <add>, %39, %cst_10 [1] : vector<8x32xf32> to vector<8xf32>
    %41 = vector.shape_cast %40 : vector<8xf32> to vector<8x1xf32>
    %cst_11 = arith.constant 1.000000e+00 : f32
    %42 = vector.broadcast %cst_11 : f32 to vector<8x1xf32>
    %43 = arith.subf %41, %42 : vector<8x1xf32>
    %44 = arith.divf %43, %38 : vector<8x1xf32>
    %45 = vector.broadcast %44 : vector<8x1xf32> to vector<8x32xf32>
    %46 = arith.subf %4, %45 : vector<8x32xf32>
    %cst_12 = arith.constant 0.000000e+00 : f32
    %47 = vector.broadcast %cst_12 : f32 to vector<8x32xf32>
    %48 = arith.maximumf %46, %47 : vector<8x32xf32>
    %c0_13 = arith.constant 0 : index
    %c0_14 = arith.constant 0 : index
    %49 = vector.load %arg2[%c0_13, %c0_14] : memref<8x32xf32, #tpu.memory_space<vmem>>, vector<8x32xf32>
    tpu.vector_store %arg2[%c0_13, %c0_14], %48 {strides = array<i32>} : memref<8x32xf32, #tpu.memory_space<vmem>>, vector<8x32xf32>,
    return
  }
  func.func @transform_0(%arg0: i32) -> (i32, i32) {
    %c0_i32 = arith.constant 0 : i32
    %c0_i32_0 = arith.constant 0 : i32
    return %arg0, %c0_i32 : i32, i32
  }
  func.func @transform_1(%arg0: i32) -> (i32, i32) {
    %c0_i32 = arith.constant 0 : i32
    %c0_i32_0 = arith.constant 0 : i32
    return %arg0, %c0_i32 : i32, i32
  }
}

</mosaic_0001>

<llo_original>
// kernel: tpu_custom_call.1
$region0: #{tpu_custom_call.1}
  #allocation0 [shape = 'u32[]', space=smem, size = 0x4, offset = 0x4, fixed_abs, tag = 'smem constant byte address 0x4 - core index']
  #allocation1 [shape = 'u32[144,128]{1,0:T(1,128)}', space=vmem, size = 0x12000, scoped, tag = 'internal scratch']
  %s0 = inlined_call_operand.hbm [shape: f32[16,32], index: 0, kind: input, shape index: {}]
  %s1 = inlined_call_operand.hbm [shape: f32[16,32], index: 1, kind: output, shape index: {}]
  %s2 = sld [smem:[#allocation0]]
  $region48: #{tpu_custom_call.1} parent=0
    _
  %s4 = ssub.s32 1, %s2
  %s5 = scalar_select 0, %s4, %s2
  $region1: #{tpu_custom_call.1} parent=0
    #allocation2 [shape = 'u8[8192]{0}', space=vmem, size = 0x2000, scoped, tag = 'input window, operand 0']
    #allocation3 [shape = 's32[2]{0}', space=sflag, size = 0x8, scoped, tag = 'scoped memory for tpu_custom_call.1']
    #allocation4 [shape = 's32[2]{0}', space=sflag, size = 0x8, scoped, tag = 'scoped memory for tpu_custom_call.1']
    #allocation5 [shape = 'u8[8192]{0}', space=vmem, size = 0x2000, scoped, tag = 'output window, operand 0']
    %6 = vsyncpa [#allocation3], 0
    %s7 = scalar_lea.sflag [#allocation3], 1
    %8 = vsyncpa %s7, 0
    %9 = vsyncpa [#allocation4], 0
    %s10 = scalar_lea.sflag [#allocation4], 1
    %11 = vsyncpa %s10, 0
    loop: start=0, step=1, limit=4
    $region2: #{tpu_custom_call.1} parent=1 // loop_pre_header
      _
    $region3: #{tpu_custom_call.1} parent=1 // loop_header
      %s13 = sphi 0, %s17
      %p14 = scmp.ge.s32.totalorder %s13, 4
      %s23 = sphi 0, %s25
      %s26 = sphi 0, %s23
      %s27 = sphi 0, %s26
      %s43 = sphi 0, %s27
      %s49 = sphi 0, %s51
      %s52 = sphi 0, %s49
      %s53 = sphi 0, %s52
      %s69 = sphi 0, %s53
    $region4: #{tpu_custom_call.1} parent=1 // loop_header_branch
      %16 = sbr.rel (%p14) target = $region8
    $region5: #{tpu_custom_call.1} parent=1 // loop_body
      %s18 = ssub.s32 %s13, 1
      %s19 = ssub.s32 %s13, 2
      %s20 = sadd.s32 %s13, 1
      %s21 = ssub.s32 %s13, %s20
      %p22 = scmp.eq.s32.totalorder %s21, 0
      %s24 = sadd.s32 %s23, 1
      %s25 = scalar_select %p22, %s23, %s24
      %p28 = pneg %p22
      %p29 = scmp.eq.s32.totalorder %s13, 1
      %p30 = por %p28, %p29
      %p31 = scmp.ne.s32.totalorder %s23, %s26
      %p32 = scmp.eq.s32.totalorder %s13, 0
      %p33 = por %p31, %p32
      %p34 = scmp.ne.s32.totalorder %s23, %s26
      %p35 = scmp.eq.s32.totalorder %s18, 1
      %p36 = por %p34, %p35
      %p37 = scmp.ne.s32.totalorder %s26, %s27
      %p38 = scmp.eq.s32.totalorder %s18, 0
      %p39 = por %p37, %p38
      %p40 = scmp.ne.s32.totalorder %s26, %s27
      %p41 = scmp.eq.s32.totalorder %s19, 1
      %p42 = por %p40, %p41
      %p44 = scmp.ne.s32.totalorder %s27, %s43
      %p45 = scmp.eq.s32.totalorder %s19, 0
      %p46 = por %p44, %p45
      %s47 = ssub.s32 %s13, %s20
      %p48 = scmp.eq.s32.totalorder %s47, 0
      %s50 = sadd.s32 %s49, 1
      %s51 = scalar_select %p48, %s49, %s50
      %p54 = pneg %p48
      %p55 = scmp.eq.s32.totalorder %s13, 1
      %p56 = por %p54, %p55
      %p57 = scmp.ne.s32.totalorder %s49, %s52
      %p58 = scmp.eq.s32.totalorder %s13, 0
      %p59 = por %p57, %p58
      %p60 = scmp.ne.s32.totalorder %s49, %s52
      %p61 = scmp.eq.s32.totalorder %s18, 1
      %p62 = por %p60, %p61
      %p63 = scmp.ne.s32.totalorder %s52, %s53
      %p64 = scmp.eq.s32.totalorder %s18, 0
      %p65 = por %p63, %p64
      %p66 = scmp.ne.s32.totalorder %s52, %s53
      %p67 = scmp.eq.s32.totalorder %s19, 1
      %p68 = por %p66, %p67
      %p70 = scmp.ne.s32.totalorder %s53, %s69
      %p71 = scmp.eq.s32.totalorder %s19, 0
      %p72 = por %p70, %p71
      %p73 = scmp.le.s32.totalorder 1, %s13
      %p74 = scmp.lt.s32.totalorder %s13, 3
      %p75 = pnand %p73, %p74
      %p76 = pneg %p75
      // Predicated region
      $region9: #{tpu_custom_call.1} parent=5 // pred_check
        _
      $region10: #{tpu_custom_call.1} parent=5 // pred_check_branch
        %78 = sbr.rel (%p75) target = $region12
      $region11: #{tpu_custom_call.1} parent=5 // pred_region
        %s79 = ssub.s32 %s13, 1
      $region12: #{tpu_custom_call.1} parent=5 // pred_fallthru
        _
      %p80 = scmp.lt.s32.totalorder %s13, 2
      // Predicated region
      $region13: #{tpu_custom_call.1} parent=5 // pred_check
        %p81 = pneg %p80
      $region14: #{tpu_custom_call.1} parent=5 // pred_check_branch
        %83 = sbr.rel (%p81) target = $region16
      $region15: #{tpu_custom_call.1} parent=5 // pred_region
        // Predicated region
        $region17: #{tpu_custom_call.1} parent=15 // pred_check
          %p84 = pneg %p33
        $region18: #{tpu_custom_call.1} parent=15 // pred_check_branch
          %86 = sbr.rel (%p84) target = $region20
        $region19: #{tpu_custom_call.1} parent=15 // pred_region
          %s87 = sand.u32 %s23, 1
          %s88 = scalar_lea.sflag [#allocation3], %s87
          %s89 = sand.u32 %s23, 1
          %s90 = smul.addr %s89, 8
          %s91 = scalar_lea.vmem [#allocation2], %s90
          %s93 = ssub.s32 128, 128
          %94 = vsyncadd %s88, %s93
          %s95 = smul.addr %s13, 128
          %s96 = scalar_lea.hbm %s0, %s95
          %s98 = sshll.u32 %s91, 4
          %s99 = int_to_ptr.vmem [resolvable:$true] %s98
          %101 = dma.hbm_to_vmem [thread:$0]  %s96, 128, %s99, %s88
        $region20: #{tpu_custom_call.1} parent=15 // pred_fallthru
          _
      $region16: #{tpu_custom_call.1} parent=5 // pred_fallthru
        _
      %p102 = scmp.le.s32.totalorder 1, %s13
      %p103 = scmp.lt.s32.totalorder %s13, 3
      %p104 = pnand %p102, %p103
      %p105 = pneg %p104
      // Predicated region
      $region21: #{tpu_custom_call.1} parent=5 // pred_check
        _
      $region22: #{tpu_custom_call.1} parent=5 // pred_check_branch
        %107 = sbr.rel (%p104) target = $region24
      $region23: #{tpu_custom_call.1} parent=5 // pred_region
        %s108 = ssub.s32 %s13, 1
        %s109 = sand.u32 %s26, 1
        %s110 = scalar_lea.sflag [#allocation3], %s109
        %s111 = sand.u32 %s26, 1
        %s112 = smul.addr %s111, 8
        %s113 = scalar_lea.vmem [#allocation2], %s112
        // Predicated region
        $region25: #{tpu_custom_call.1} parent=23 // pred_check
          %p114 = pneg %p39
        $region26: #{tpu_custom_call.1} parent=23 // pred_check_branch
          %116 = sbr.rel (%p114) target = $region28
        $region27: #{tpu_custom_call.1} parent=23 // pred_region
          %117 = dma.done %s110, 128
        $region28: #{tpu_custom_call.1} parent=23 // pred_fallthru
          _
        %s118 = sand.u32 %s26, 1
        %s119 = scalar_lea.sflag [#allocation3], %s118
        %s120 = sand.u32 %s26, 1
        %s121 = smul.addr %s120, 8
        %s122 = scalar_lea.vmem [#allocation2], %s121
        %p123 = pneg %p39
        %p124 = pneg %p36
        %p125 = pneg %p65
        %p126 = pneg %p62
        %s127 = sand.u32 %s52, 1
        %s128 = scalar_lea.sflag [#allocation4], %s127
        %s129 = sand.u32 %s52, 1
        %s130 = smul.addr %s129, 8
        %s131 = scalar_lea.vmem [#allocation5], %s130
        %v132 = vld [vmem:[%s113] sm:$0xff]
        %vm133 = vcmask 261120
        %v134 = vsel %vm133, %v132, -inf
        %135 = vmax.xlane.f32.xlu0 %v134
        %v136 = vpop.xlane.xlu0 %135
        %v137 = vsub.f32 %v132, %v136
        loop: start=0, step=1, limit=6
        $region29: #{tpu_custom_call.1} parent=23 // loop_pre_header
          _
        $region30: #{tpu_custom_call.1} parent=23 // loop_header
          %s139 = sphi 0, %s143
          %p140 = scmp.ge.s32.totalorder %s139, 6
          %v144 = vphi -1.0, %v166
          %v145 = vphi 0.0, %v167
        $region31: #{tpu_custom_call.1} parent=23 // loop_header_branch
          %142 = sbr.rel (%p140) target = $region35
        $region32: #{tpu_custom_call.1} parent=23 // loop_body
          %v146 = vadd.f32 %v144, %v145
          %v147 = vmul.f32 %v146, 0.5
          %v148 = vsub.f32 %v137, %v147
          %v149 = vmax.f32 %v148, 0.0
          %v150 = vsel %vm133, %v149, 0.0
          %151 = vadd.xlane.f32.xlu0 %v150
          %v152 = vpop.xlane.xlu0 %151
          %v153 = vsub.f32 %v152, 1.0
          %vm154 = vcmp.ge.f32.partialorder %v153, 0.0
          %v155 = vsel %vm154, %v147, %v144
          %v156 = vsel %vm154, %v145, %v147
          %v157 = vadd.f32 %v155, %v156
          %v158 = vmul.f32 %v157, 0.5
          %v159 = vsub.f32 %v137, %v158
          %v160 = vmax.f32 %v159, 0.0
          %v161 = vsel %vm133, %v160, 0.0
          %162 = vadd.xlane.f32.xlu0 %v161
          %v163 = vpop.xlane.xlu0 %162
          %v164 = vsub.f32 %v163, 1.0
          %vm165 = vcmp.ge.f32.partialorder %v164, 0.0
          %v166 = vsel %vm165, %v158, %v155
          %v167 = vsel %vm165, %v156, %v158
        $region33: #{tpu_custom_call.1} parent=23 // loop_footer
          %s143 = sadd.s32 1, %s139
        $region34: #{tpu_custom_call.1} parent=23 // loop_footer_branch
          %138 = sbr.rel target = $region30
        $region35: #{tpu_custom_call.1} parent=23 // loop_exit
          _
        %vm168 = vcmp.gt.f32.partialorder %v137, %v144
        %v169 = vsel %vm168, 1, 0
        %v170 = vcvt.s32.f32 %v169
        %v171 = vsel %vm133, %v170, 0.0
        %172 = vadd.xlane.f32.xlu0 %v171
        %v173 = vpop.xlane.xlu0 %172
        %v174 = vmul.f32 %v170, %v137
        %v175 = vsel %vm133, %v174, 0.0
        %176 = vadd.xlane.f32.xlu0 %v175
        %v177 = vpop.xlane.xlu0 %176
        %v178 = vsub.f32 %v177, 1.0
        %v179 = vrcp.pop %v173
        %v180 = vmul.f32 %v178, %v179
        %vm181 = vcmp.gt.f32.partialorder %v137, %v180
        %v182 = vsel %vm181, 1, 0
        %v183 = vcvt.s32.f32 %v182
        %v184 = vsel %vm133, %v183, 0.0
        %185 = vadd.xlane.f32.xlu0 %v184
        %v186 = vpop.xlane.xlu0 %185
        %v187 = vmul.f32 %v183, %v137
        %v188 = vsel %vm133, %v187, 0.0
        %189 = vadd.xlane.f32.xlu0 %v188
        %v190 = vpop.xlane.xlu0 %189
        %v191 = vsub.f32 %v190, 1.0
        %v192 = vrcp.pop %v186
        %v193 = vmul.f32 %v191, %v192
        %vm194 = vcmp.gt.f32.partialorder %v137, %v193
        %v195 = vsel %vm194, 1, 0
        %v196 = vcvt.s32.f32 %v195
        %v197 = vsel %vm133, %v196, 0.0
        %198 = vadd.xlane.f32.xlu0 %v197
        %v199 = vpop.xlane.xlu0 %198
        %v200 = vmul.f32 %v196, %v137
        %v201 = vsel %vm133, %v200, 0.0
        %202 = vadd.xlane.f32.xlu0 %v201
        %v203 = vpop.xlane.xlu0 %202
        %v204 = vsub.f32 %v203, 1.0
        %v205 = vrcp.pop %v199
        %v206 = vmul.f32 %v204, %v205
        %v207 = vsub.f32 %v137, %v206
        %v208 = vmax.f32 %v207, 0.0
        %209 = vst.msk [vmem:[%s131] sm:$0xff] %vm133, %v208
        %s210 = sand.u32 %s52, 1
        %s211 = scalar_lea.sflag [#allocation4], %s210
        %s212 = sand.u32 %s52, 1
        %s213 = smul.addr %s212, 8
        %s214 = scalar_lea.vmem [#allocation5], %s213
        // Predicated region
        $region36: #{tpu_custom_call.1} parent=23 // pred_check
          %p215 = pneg %p62
        $region37: #{tpu_custom_call.1} parent=23 // pred_check_branch
          %217 = sbr.rel (%p215) target = $region39
        $region38: #{tpu_custom_call.1} parent=23 // pred_region
          %s219 = ssub.s32 128, 128
          %220 = vsyncadd %s211, %s219
          %s221 = smul.addr %s18, 128
          %s222 = scalar_lea.hbm %s1, %s221
          %s224 = sshll.u32 %s214, 4
          %s225 = int_to_ptr.vmem [resolvable:$true] %s224
          %227 = dma.vmem_to_hbm [thread:$0]  %s225, 128, %s222, %s211
        $region39: #{tpu_custom_call.1} parent=23 // pred_fallthru
          _
      $region24: #{tpu_custom_call.1} parent=5 // pred_fallthru
        _
      %p228 = scmp.le.s32.totalorder 2, %s13
      // Predicated region
      $region40: #{tpu_custom_call.1} parent=5 // pred_check
        %p229 = pneg %p228
      $region41: #{tpu_custom_call.1} parent=5 // pred_check_branch
        %231 = sbr.rel (%p229) target = $region43
      $region42: #{tpu_custom_call.1} parent=5 // pred_region
        %s232 = ssub.s32 %s13, 2
        // Predicated region
        $region44: #{tpu_custom_call.1} parent=42 // pred_check
          %p233 = pneg %p68
        $region45: #{tpu_custom_call.1} parent=42 // pred_check_branch
          %235 = sbr.rel (%p233) target = $region47
        $region46: #{tpu_custom_call.1} parent=42 // pred_region
          %s236 = sand.u32 %s53, 1
          %s237 = scalar_lea.sflag [#allocation4], %s236
          %s238 = sand.u32 %s53, 1
          %s239 = smul.addr %s238, 8
          %s240 = scalar_lea.vmem [#allocation5], %s239
          %241 = dma.done %s237, 128
        $region47: #{tpu_custom_call.1} parent=42 // pred_fallthru
          _
      $region43: #{tpu_custom_call.1} parent=5 // pred_fallthru
        _
    $region6: #{tpu_custom_call.1} parent=1 // loop_footer
      %s17 = sadd.s32 1, %s13
    $region7: #{tpu_custom_call.1} parent=1 // loop_footer_branch
      %12 = sbr.rel target = $region3
    $region8: #{tpu_custom_call.1} parent=1 // loop_exit
      _
    %242 = vsyncpa [#allocation3], 1
    %s243 = scalar_lea.sflag [#allocation3], 1
    %244 = vsyncpa %s243, 1
    %245 = vsyncpa [#allocation4], 1
    %s246 = scalar_lea.sflag [#allocation4], 1
    %247 = vsyncpa %s246, 1

</llo_original>
